<compile_context>
chip_gen: v7x
topology: tpu7x:2x2x1
jax: 0.10.0
libtpu: 0.0.40
codegen_flags: <defaults>
</compile_context>

<pallas_src>
import functools

import jax
import jax.numpy as jnp
from jax.experimental import pallas as pl
from jax.experimental.pallas import tpu as pltpu


def _round_up(x, m):
    return ((x + m - 1) // m) * m


def _mlp_kernel(x_ref, w1_ref, b1_ref, w2_ref, b2_ref, o_ref):
    # f32 tile -> bf16 on the VPU (hidden under the MXU work)
    x = x_ref[...].astype(jnp.bfloat16)
    # linear1: bf16 x @ bf16 W1 -> f32 accumulate on the MXU
    h = jnp.dot(x, w1_ref[...], preferred_element_type=jnp.float32)
    # bias + relu in f32 on the VPU
    h = jnp.maximum(h + b1_ref[...], 0.0)
    # linear2: bf16 h @ bf16 W2 (lane-padded to 128) -> f32 accumulate
    out = jnp.dot(h.astype(jnp.bfloat16), w2_ref[...],
                  preferred_element_type=jnp.float32)
    # bias add in f32, store lane-dense bf16
    o_ref[...] = (out + b2_ref[...]).astype(o_ref.dtype)


def prepare_params(w1, b1, w2, b2):
    """One-time parameter conversion (call once at init, NOT per forward).

    w1: (D_in, H), b1: (H,) or (1,H), w2: (H, D_out), b2: (D_out,) or (1,D_out)
    Returns bf16 W1, f32 b1 row, lane-padded bf16 W2, lane-padded f32 b2 row,
    and the true output size D_out (python int).
    """
    d_in, h = w1.shape
    d_out = w2.shape[1]
    n_pad = _round_up(max(d_out, 128), 128)

    w1b = w1.astype(jnp.bfloat16)
    b1f = b1.reshape(1, h).astype(jnp.float32)
    w2p = jnp.zeros((h, n_pad), jnp.bfloat16).at[:, :d_out].set(
        w2.astype(jnp.bfloat16))
    b2p = jnp.zeros((1, n_pad), jnp.float32).at[:, :d_out].set(
        b2.reshape(1, d_out).astype(jnp.float32))
    return w1b, b1f, w2p, b2p, d_out


@functools.partial(jax.jit, static_argnames=("d_out", "block_b"))
def eva_classifier_forward(x, w1b, b1f, w2p, b2p, *, d_out, block_b=512):
    """Fused forward pass of EvaClassifier.

    x   : (B, D_in) float32
    w1b : (D_in, H)   bfloat16       (from prepare_params)
    b1f : (1, H)      float32
    w2p : (H, n_pad)  bfloat16, lane-padded
    b2p : (1, n_pad)  float32, lane-padded
    returns (B, d_out) float32
    """
    B, D_in = x.shape
    H = w1b.shape[1]
    n_pad = w2p.shape[1]

    # Batch tile: multiple of 16 sublanes (bf16 output packing; f32 input
    # needs 8 which is implied).  Clamp down to a 16-multiple even for odd
    # user-supplied block_b.
    b16 = _round_up(B, 16)
    tb = max(16, min(block_b, b16))
    tb = (tb // 16) * 16
    # Keep at least 2 grid steps when the batch allows it so the "parallel"
    # batch axis gives both v7x TensorCores work.
    if b16 // tb < 2 and b16 >= 32:
        tb = max(16, _round_up(b16 // 2, 16))
    b_pad = _round_up(B, tb)
    grid = (b_pad // tb,)

    # Pad only the ragged remainder rows (f32, no dtype-cast copy of x).
    # Zero-cost when B is already a multiple of tb.
    if b_pad != B:
        x = jnp.pad(x, ((0, b_pad - B), (0, 0)))

    flops = 2 * b_pad * (D_in * H + H * n_pad)
    bytes_accessed = (b_pad * D_in * 4          # x read (f32, once)
                      + D_in * H * 2            # W1 (bf16)
                      + H * n_pad * 2           # W2 (bf16, padded)
                      + (H + n_pad) * 4         # biases (f32)
                      + b_pad * n_pad * 2)      # out write (bf16, padded)

    # VMEM footprint: double-buffered x / out tiles, resident weights
    # (conservatively counted twice), plus in-flight f32 intermediates.
    vmem_bytes = (2 * tb * D_in * 4
                  + 2 * tb * n_pad * 2
                  + 2 * (D_in * H + H * n_pad) * 2
                  + 2 * (H + n_pad) * 4
                  + tb * H * 4 + tb * n_pad * 4)
    vmem_limit = int(min(64 << 20, max(2 * vmem_bytes, 16 << 20)))

    out = pl.pallas_call(
        _mlp_kernel,
        out_shape=jax.ShapeDtypeStruct((b_pad, n_pad), jnp.bfloat16),
        grid=grid,
        in_specs=[
            pl.BlockSpec((tb, D_in), lambda i: (i, 0)),    # x tile (moves)
            pl.BlockSpec((D_in, H), lambda i: (0, 0)),     # W1 (resident)
            pl.BlockSpec((1, H), lambda i: (0, 0)),        # b1 (resident)
            pl.BlockSpec((H, n_pad), lambda i: (0, 0)),    # W2 (resident)
            pl.BlockSpec((1, n_pad), lambda i: (0, 0)),    # b2 (resident)
        ],
        out_specs=pl.BlockSpec((tb, n_pad), lambda i: (i, 0)),
        compiler_params=pltpu.CompilerParams(
            dimension_semantics=("parallel",),
            vmem_limit_bytes=vmem_limit),
        cost_estimate=pl.CostEstimate(
            flops=flops, transcendentals=0, bytes_accessed=bytes_accessed),
    )(x, w1b, b1f, w2p, b2p)

    # Slice off the batch/lane padding and return f32 like the torch module.
    return out[:B, :d_out].astype(jnp.float32)


def init_params(key, input_size, nn_size, output_size):
    """Deterministic init mimicking nn.Linear's uniform(-1/sqrt(fan_in), ...)."""
    k1, k2, k3, k4 = jax.random.split(key, 4)
    bound1 = 1.0 / jnp.sqrt(input_size)
    bound2 = 1.0 / jnp.sqrt(nn_size)
    # stored already transposed to (in, out) for the kernel
    w1 = jax.random.uniform(k1, (input_size, nn_size), jnp.float32,
                            minval=-bound1, maxval=bound1)
    b1 = jax.random.uniform(k2, (1, nn_size), jnp.float32,
                            minval=-bound1, maxval=bound1)
    w2 = jax.random.uniform(k3, (nn_size, output_size), jnp.float32,
                            minval=-bound2, maxval=bound2)
    b2 = jax.random.uniform(k4, (1, output_size), jnp.float32,
                            minval=-bound2, maxval=bound2)
    return w1, b1, w2, b2


if __name__ == "__main__":
    # Small shapes consistent with the module (defaults 1024/512/2 scaled down).
    batch, input_size, nn_size, output_size = 4, 32, 16, 2

    key = jax.random.PRNGKey(0)
    kx, kp = jax.random.split(key)
    x = jax.random.normal(kx, (batch, input_size), jnp.float32)
    w1, b1, w2, b2 = init_params(kp, input_size, nn_size, output_size)

    # One-time parameter conversion (hoisted out of the per-call path).
    w1b, b1f, w2p, b2p, d_out = prepare_params(w1, b1, w2, b2)

    out = eva_classifier_forward(x, w1b, b1f, w2p, b2p, d_out=d_out)
    out = jax.block_until_ready(out)

    # Reference check in plain JAX (f32).
    ref_f32 = jnp.maximum(x @ w1 + b1, 0.0) @ w2 + b2
    assert out.shape == (batch, output_size)
    # bf16 weights/activations/output -> looser tolerance vs f32 reference.
    assert jnp.allclose(out, ref_f32, atol=3e-2, rtol=3e-2), (
        jnp.max(jnp.abs(out - ref_f32)))

    print("KERNEL_OK")
</pallas_src>

<mosaic_0001>
module attributes {stable_mosaic.version = 11 : i64} {
  func.func @_mlp_kernel(%arg0: i32, %arg1: memref<16x32xf32, #tpu.memory_space<vmem>>, %arg2: memref<32x16xbf16, #tpu.memory_space<vmem>>, %arg3: memref<1x16xf32, #tpu.memory_space<vmem>>, %arg4: memref<16x128xbf16, #tpu.memory_space<vmem>>, %arg5: memref<1x128xf32, #tpu.memory_space<vmem>>, %arg6: memref<16x128xbf16, #tpu.memory_space<vmem>>) attributes {dimension_semantics = [#tpu.dimension_semantics<parallel>], iteration_bounds = array<i64: 1>, scalar_prefetch = 0 : i64, scratch_operands = 0 : i64, tpu.core_type = #tpu.core_type<tc>, window_params = [{transform_indices = @transform_0, window_bounds = array<i64: 16, 32>}, {pipeline_mode = #tpu.pipeline_mode<synchronous>, transform_indices = @transform_1, window_bounds = array<i64: 32, 16>}, {pipeline_mode = #tpu.pipeline_mode<synchronous>, transform_indices = @transform_2, window_bounds = array<i64: 1, 16>}, {pipeline_mode = #tpu.pipeline_mode<synchronous>, transform_indices = @transform_3, window_bounds = array<i64: 16, 128>}, {pipeline_mode = #tpu.pipeline_mode<synchronous>, transform_indices = @transform_4, window_bounds = array<i64: 1, 128>}, {transform_indices = @transform_5, window_bounds = array<i64: 16, 128>}]} {
    %c0 = arith.constant 0 : index
    %c0_0 = arith.constant 0 : index
    %0 = vector.load %arg1[%c0, %c0_0] : memref<16x32xf32, #tpu.memory_space<vmem>>, vector<16x32xf32>
    %1 = arith.truncf %0 : vector<16x32xf32> to vector<16x32xbf16>
    %c0_1 = arith.constant 0 : index
    %c0_2 = arith.constant 0 : index
    %2 = vector.load %arg2[%c0_1, %c0_2] : memref<32x16xbf16, #tpu.memory_space<vmem>>, vector<32x16xbf16>
    %cst = arith.constant dense<0.000000e+00> : vector<16x16xf32>
    %3 = tpu.matmul %1, %2, %cst {dimension_numbers = #tpu.dot_dimension_numbers<[1], [0], [0], [1], [0, 0, 1, 1], [], []>} : vector<16x32xbf16>, vector<32x16xbf16>, vector<16x16xf32> -> vector<16x16xf32>
    %c0_3 = arith.constant 0 : index
    %c0_4 = arith.constant 0 : index
    %4 = vector.load %arg3[%c0_3, %c0_4] : memref<1x16xf32, #tpu.memory_space<vmem>>, vector<1x16xf32>
    %5 = vector.broadcast %4 : vector<1x16xf32> to vector<16x16xf32>
    %6 = arith.addf %3, %5 : vector<16x16xf32>
    %cst_5 = arith.constant 0.000000e+00 : f32
    %7 = vector.broadcast %cst_5 : f32 to vector<16x16xf32>
    %8 = arith.maximumf %6, %7 : vector<16x16xf32>
    %9 = arith.truncf %8 : vector<16x16xf32> to vector<16x16xbf16>
    %c0_6 = arith.constant 0 : index
    %c0_7 = arith.constant 0 : index
    %10 = vector.load %arg4[%c0_6, %c0_7] : memref<16x128xbf16, #tpu.memory_space<vmem>>, vector<16x128xbf16>
    %cst_8 = arith.constant dense<0.000000e+00> : vector<16x128xf32>
    %11 = tpu.matmul %9, %10, %cst_8 {dimension_numbers = #tpu.dot_dimension_numbers<[1], [0], [0], [1], [0, 0, 1, 1], [], []>} : vector<16x16xbf16>, vector<16x128xbf16>, vector<16x128xf32> -> vector<16x128xf32>
    %c0_9 = arith.constant 0 : index
    %c0_10 = arith.constant 0 : index
    %12 = vector.load %arg5[%c0_9, %c0_10] : memref<1x128xf32, #tpu.memory_space<vmem>>, vector<1x128xf32>
    %13 = vector.broadcast %12 : vector<1x128xf32> to vector<16x128xf32>
    %14 = arith.addf %11, %13 : vector<16x128xf32>
    %15 = arith.truncf %14 : vector<16x128xf32> to vector<16x128xbf16>
    %c0_11 = arith.constant 0 : index
    %c0_12 = arith.constant 0 : index
    %16 = vector.load %arg6[%c0_11, %c0_12] : memref<16x128xbf16, #tpu.memory_space<vmem>>, vector<16x128xbf16>
    tpu.vector_store %arg6[%c0_11, %c0_12], %15 {strides = array<i32>} : memref<16x128xbf16, #tpu.memory_space<vmem>>, vector<16x128xbf16>,
    return
  }
  func.func @transform_0(%arg0: i32) -> (i32, i32) {
    %c0_i32 = arith.constant 0 : i32
    %c0_i32_0 = arith.constant 0 : i32
    return %arg0, %c0_i32 : i32, i32
  }
  func.func @transform_1(%arg0: i32) -> (i32, i32) {
    %c0_i32 = arith.constant 0 : i32
    %c0_i32_0 = arith.constant 0 : i32
    %c0_i32_1 = arith.constant 0 : i32
    return %c0_i32, %c0_i32_0 : i32, i32
  }
  func.func @transform_2(%arg0: i32) -> (i32, i32) {
    %c0_i32 = arith.constant 0 : i32
    %c0_i32_0 = arith.constant 0 : i32
    %c0_i32_1 = arith.constant 0 : i32
    return %c0_i32, %c0_i32_0 : i32, i32
  }
  func.func @transform_3(%arg0: i32) -> (i32, i32) {
    %c0_i32 = arith.constant 0 : i32
    %c0_i32_0 = arith.constant 0 : i32
    %c0_i32_1 = arith.constant 0 : i32
    return %c0_i32, %c0_i32_0 : i32, i32
  }
  func.func @transform_4(%arg0: i32) -> (i32, i32) {
    %c0_i32 = arith.constant 0 : i32
    %c0_i32_0 = arith.constant 0 : i32
    %c0_i32_1 = arith.constant 0 : i32
    return %c0_i32, %c0_i32_0 : i32, i32
  }
  func.func @transform_5(%arg0: i32) -> (i32, i32) {
    %c0_i32 = arith.constant 0 : i32
    %c0_i32_0 = arith.constant 0 : i32
    return %arg0, %c0_i32 : i32, i32
  }
}

</mosaic_0001>

<llo_original>
// kernel: eva_classifier_forward.1
$region0: #{eva_classifier_forward.1}
  #allocation0 [shape = 'u32[]', space=smem, size = 0x4, offset = 0x4, fixed_abs, tag = 'smem constant byte address 0x4 - core index']
  #allocation1 [shape = 'u32[144,128]{1,0:T(1,128)}', space=vmem, size = 0x12000, scoped, tag = 'internal scratch']
  %s0 = inlined_call_operand.vmem [shape: f32[16,32], index: 0, kind: input, shape index: {}]
  %s1 = inlined_call_operand.vmem [shape: bf16[32,16], index: 1, kind: input, shape index: {}]
  %s2 = inlined_call_operand.vmem [shape: f32[1,16], index: 2, kind: input, shape index: {}]
  %s3 = inlined_call_operand.vmem [shape: bf16[16,128], index: 3, kind: input, shape index: {}]
  %s4 = inlined_call_operand.vmem [shape: f32[1,128], index: 4, kind: input, shape index: {}]
  %s5 = inlined_call_operand.vmem [shape: bf16[16,128], index: 5, kind: output, shape index: {}]
  %s6 = sld [smem:[#allocation0]]
  $region30: #{eva_classifier_forward.1} parent=0
    _
  %s8 = ssub.s32 1, %s6
  %s9 = scalar_select 0, %s8, %s6
  // Predicated region
  $region2: #{eva_classifier_forward.1} parent=0 // pred_check
    _
  $region3: #{eva_classifier_forward.1} parent=0 // pred_check_branch
    %11 = sbr.rel (0) target = $region5
  $region4: #{eva_classifier_forward.1} parent=0 // pred_region
    _
  $region5: #{eva_classifier_forward.1} parent=0 // pred_fallthru
    _
  // Predicated region
  $region6: #{eva_classifier_forward.1} parent=0 // pred_check
    _
  $region7: #{eva_classifier_forward.1} parent=0 // pred_check_branch
    %13 = sbr.rel (0) target = $region9
  $region8: #{eva_classifier_forward.1} parent=0 // pred_region
    _
  $region9: #{eva_classifier_forward.1} parent=0 // pred_fallthru
    _
  // Predicated region
  $region10: #{eva_classifier_forward.1} parent=0 // pred_check
    _
  $region11: #{eva_classifier_forward.1} parent=0 // pred_check_branch
    %15 = sbr.rel (0) target = $region13
  $region12: #{eva_classifier_forward.1} parent=0 // pred_region
    _
  $region13: #{eva_classifier_forward.1} parent=0 // pred_fallthru
    _
  // Predicated region
  $region14: #{eva_classifier_forward.1} parent=0 // pred_check
    _
  $region15: #{eva_classifier_forward.1} parent=0 // pred_check_branch
    %17 = sbr.rel (0) target = $region17
  $region16: #{eva_classifier_forward.1} parent=0 // pred_region
    _
  $region17: #{eva_classifier_forward.1} parent=0 // pred_fallthru
    _
  // Predicated region
  $region18: #{eva_classifier_forward.1} parent=0 // pred_check
    _
  $region19: #{eva_classifier_forward.1} parent=0 // pred_check_branch
    %19 = sbr.rel (0) target = $region21
  $region20: #{eva_classifier_forward.1} parent=0 // pred_region
    _
  $region21: #{eva_classifier_forward.1} parent=0 // pred_fallthru
    _
  %v21 = vld [vmem:[%s0] sm:$0xff]
  %v22 = vld [vmem:[%s0 + $0x8] sm:$0xff]
  %v23 = vpack.c.bf16 %v22, %v21
  %v24 = vld [vmem:[%s1] sm:$0xf]
  %v25 = vld [vmem:[%s1 + $0x4] sm:$0xf]
  %v26 = vld [vmem:[%s1 + $0x8] sm:$0xf]
  %v27 = vld [vmem:[%s1 + $0xc] sm:$0xf]
  %v28 = vld [vmem:[%s2] sm:$0x1]
  %v30 = vlaneseq
  %v31 = vshrl.u32 %v30, 7
  %v32 = vsub.s32 0, %v31
  %v33 = vrot.slane %v28, %v32
  %v39 = vunpack.c.l.b16 %v24
  %v40 = vunpack.c.l.b16 %v25
  %v41 = vunpack.c.l.b16 %v26
  %v42 = vunpack.c.l.b16 %v27
  %v43 = vpack.c.b16 %v40, %v39
  %v44 = vpack.c.b16 %v42, %v41
  %vm47 = vcmask 261120
  %v49 = vsel %vm47, %v23, 0
  %51 = vmatprep.subr.bf16.mxu0 0
  %52 = vmatpush1.bf16.msra.mxu0 %v43
  %53 = vmatprep.subr.bf16.mxu0 0
  %54 = vmatpush1.bf16.msra.mxu0 %v44
  %55 = vmatprep.subr.bf16.mxu0 0
  %56 = vmatpush1.bf16.msra.mxu0 0
  %57 = vmatprep.subr.bf16.mxu0 0
  %58 = vmatpush1.bf16.msra.mxu0 0
  %59 = vmatprep.subr.bf16.mxu0 0
  %60 = vmatpush1.bf16.msra.mxu0 0
  %61 = vmatprep.subr.bf16.mxu0 0
  %62 = vmatpush1.bf16.msra.mxu0 0
  %63 = vmatprep.subr.bf16.mxu0 0
  %64 = vmatpush1.bf16.msra.mxu0 0
  %65 = vmatprep.subr.bf16.mxu0 0
  %66 = vmatpush1.bf16.msra.mxu0 0
  %67 = vmatprep.subr.bf16.mxu0 0
  %68 = vmatpush1.bf16.msra.mxu0 0
  %69 = vmatprep.subr.bf16.mxu0 0
  %70 = vmatpush1.bf16.msra.mxu0 0
  %71 = vmatprep.subr.bf16.mxu0 0
  %72 = vmatpush1.bf16.msra.mxu0 0
  %73 = vmatprep.subr.bf16.mxu0 0
  %74 = vmatpush1.bf16.msra.mxu0 0
  %75 = vmatprep.subr.bf16.mxu0 0
  %76 = vmatpush1.bf16.msra.mxu0 0
  %77 = vmatprep.subr.bf16.mxu0 0
  %78 = vmatpush1.bf16.msra.mxu0 0
  %79 = vmatprep.subr.bf16.mxu0 0
  %80 = vmatpush1.bf16.msra.mxu0 0
  %81 = vmatprep.subr.bf16.mxu0 0
  %82 = vmatpush1.bf16.msra.mxu0 0
  %83 = vmatprep.mubr.bf16.mxu0 0
  %84 = vmatmul.mubr.bf16.gmra.mrb[0].mxu0 %v49
  %v85 = vpop.f32.mrb[0].mxu0
  %v86 = vadd.f32 %v33, %v85
  %v87 = vpop.f32.mrb[0].mxu0
  %v88 = vpop.f32.mrb[0].mxu0
  %v89 = vadd.f32 %v33, %v88
  %v90 = vpop.f32.mrb[0].mxu0
  %91 = vdwg.mxu0
  %v92 = vmax.f32 %v86, 0.0
  %v93 = vmax.f32 %v89, 0.0
  %v94 = vpack.c.bf16 %v93, %v92
  %v95 = vld [vmem:[%s3] sm:$0xf]
  %v96 = vld [vmem:[%s3 + $0x4] sm:$0xf]
  %v97 = vld [vmem:[%s4] sm:$0x1]
  %v99 = vlaneseq
  %v100 = vshrl.u32 %v99, 7
  %v101 = vsub.s32 0, %v100
  %v102 = vrot.slane %v97, %v101
  %v106 = vunpack.c.l.b16 %v95
  %v107 = vunpack.c.l.b16 %v96
  %v108 = vpack.c.b16 %v107, %v106
  %vm110 = vcmask 130048
  %v112 = vsel %vm110, %v94, 0
  %114 = vmatprep.subr.bf16.mxu0 0
  %115 = vmatpush1.bf16.msra.mxu0 %v108
  %116 = vmatprep.subr.bf16.mxu0 0
  %117 = vmatpush1.bf16.msra.mxu0 0
  %118 = vmatprep.subr.bf16.mxu0 0
  %119 = vmatpush1.bf16.msra.mxu0 0
  %120 = vmatprep.subr.bf16.mxu0 0
  %121 = vmatpush1.bf16.msra.mxu0 0
  %122 = vmatprep.subr.bf16.mxu0 0
  %123 = vmatpush1.bf16.msra.mxu0 0
  %124 = vmatprep.subr.bf16.mxu0 0
  %125 = vmatpush1.bf16.msra.mxu0 0
  %126 = vmatprep.subr.bf16.mxu0 0
  %127 = vmatpush1.bf16.msra.mxu0 0
  %128 = vmatprep.subr.bf16.mxu0 0
  %129 = vmatpush1.bf16.msra.mxu0 0
  %130 = vmatprep.subr.bf16.mxu0 0
  %131 = vmatpush1.bf16.msra.mxu0 0
  %132 = vmatprep.subr.bf16.mxu0 0
  %133 = vmatpush1.bf16.msra.mxu0 0
  %134 = vmatprep.subr.bf16.mxu0 0
  %135 = vmatpush1.bf16.msra.mxu0 0
  %136 = vmatprep.subr.bf16.mxu0 0
  %137 = vmatpush1.bf16.msra.mxu0 0
  %138 = vmatprep.subr.bf16.mxu0 0
  %139 = vmatpush1.bf16.msra.mxu0 0
  %140 = vmatprep.subr.bf16.mxu0 0
  %141 = vmatpush1.bf16.msra.mxu0 0
  %142 = vmatprep.subr.bf16.mxu0 0
  %143 = vmatpush1.bf16.msra.mxu0 0
  %144 = vmatprep.subr.bf16.mxu0 0
  %145 = vmatpush1.bf16.msra.mxu0 0
  %146 = vmatprep.mubr.bf16.mxu0 0
  %147 = vmatmul.mubr.bf16.gmra.mrb[0].mxu0 %v112
  %v148 = vpop.f32.mrb[0].mxu0
  %v149 = vadd.f32 %v102, %v148
  %v150 = vpop.f32.mrb[0].mxu0
  %v151 = vpop.f32.mrb[0].mxu0
  %v152 = vadd.f32 %v102, %v151
  %v153 = vpop.f32.mrb[0].mxu0
  %154 = vdwg.mxu0
  %v155 = vpack.c.bf16 %v152, %v149
  %v157 = vunpack.c.l.b16 %v155
  %v158 = vunpack.c.h.b16 %v155
  %v159 = vpack.c.b16 %v157, %v157
  %v160 = vpack.c.b16 %v158, %v158
  %163 = vst [vmem:[%s5] sm:$0xf] %v159
  %164 = vst [vmem:[%s5 + $0x4] sm:$0xf] %v160
  // Predicated region
  $region22: #{eva_classifier_forward.1} parent=0 // pred_check
    _
  $region23: #{eva_classifier_forward.1} parent=0 // pred_check_branch
    %166 = sbr.rel (0) target = $region25
  $region24: #{eva_classifier_forward.1} parent=0 // pred_region
    _
  $region25: #{eva_classifier_forward.1} parent=0 // pred_fallthru
    _
  // Predicated region
  $region26: #{eva_classifier_forward.1} parent=0 // pred_check
    _
  $region27: #{eva_classifier_forward.1} parent=0 // pred_check_branch
    %168 = sbr.rel (0) target = $region29
  $region28: #{eva_classifier_forward.1} parent=0 // pred_region
    _
  $region29: #{eva_classifier_forward.1} parent=0 // pred_fallthru
    _

</llo_original>
